<compile_context>
chip_gen: v7x
topology: tpu7x:2x2x1
jax: 0.10.0
libtpu: 0.0.40
codegen_flags: <defaults>
</compile_context>

<pallas_src>
import jax
import jax.numpy as jnp
from jax.experimental import pallas as pl
from jax.experimental.pallas import tpu as pltpu


def _round_up(x, m):
    return ((x + m - 1) // m) * m


# ----------------------------- Pallas kernels ------------------------------ #
def _bconv_gemm_kernel_single_k(p_ref, w_ref, o_ref):
    # Whole contraction dim in one block: MXU result goes straight to the
    # lane-dense f32 output tile (no scratch, no init/finalize).
    o_ref[...] = jnp.dot(p_ref[...], w_ref[...],
                         preferred_element_type=jnp.float32)


def _bconv_gemm_kernel_multi_k(p_ref, w_ref, o_ref, acc_ref):
    # p_ref: (TM, TK) bf16 signed im2col patch tile (+/-1, 0 in padding)
    # w_ref: (TK, TN) bf16 signed weight tile
    # o_ref: (TM, TN) f32 output tile
    # acc_ref: (TM, TN) f32 accumulator (persists across the K grid axis)
    @pl.when(pl.program_id(2) == 0)
    def _init():
        acc_ref[...] = jnp.zeros_like(acc_ref)

    acc_ref[...] += jnp.dot(p_ref[...], w_ref[...],
                            preferred_element_type=jnp.float32)

    @pl.when(pl.program_id(2) == pl.num_programs(2) - 1)
    def _finalize():
        o_ref[...] = acc_ref[...].astype(o_ref.dtype)


def _bconv_gemm(patches, w2d, tm, tn, tk):
    # patches: (M_p, K_p) bf16, already signed + zero padded
    # w2d:     (K_p, N_p) bf16, already signed + zero padded
    M_p, K_p = patches.shape
    _, N_p = w2d.shape
    assert M_p % tm == 0 and K_p % tk == 0 and N_p % tn == 0

    n_k = K_p // tk
    flops = 2 * M_p * K_p * N_p
    bytes_accessed = (patches.size * patches.dtype.itemsize
                      + w2d.size * w2d.dtype.itemsize
                      + M_p * N_p * 4)
    cost = pl.CostEstimate(flops=flops, transcendentals=0,
                           bytes_accessed=bytes_accessed)
    out_shape = jax.ShapeDtypeStruct((M_p, N_p), jnp.float32)

    if n_k == 1:
        # Fast path: single K block -> direct write, 2-D parallel grid.
        return pl.pallas_call(
            _bconv_gemm_kernel_single_k,
            out_shape=out_shape,
            grid_spec=pltpu.PrefetchScalarGridSpec(
                num_scalar_prefetch=0,
                grid=(M_p // tm, N_p // tn),
                in_specs=[
                    pl.BlockSpec((tm, tk), lambda i, j: (i, 0)),
                    pl.BlockSpec((tk, tn), lambda i, j: (0, j)),
                ],
                out_specs=pl.BlockSpec((tm, tn), lambda i, j: (i, j)),
            ),
            compiler_params=pltpu.CompilerParams(
                dimension_semantics=("parallel", "parallel")),
            cost_estimate=cost,
        )(patches, w2d)

    return pl.pallas_call(
        _bconv_gemm_kernel_multi_k,
        out_shape=out_shape,
        grid_spec=pltpu.PrefetchScalarGridSpec(
            num_scalar_prefetch=0,
            grid=(M_p // tm, N_p // tn, n_k),
            in_specs=[
                pl.BlockSpec((tm, tk), lambda i, j, k: (i, k)),
                pl.BlockSpec((tk, tn), lambda i, j, k: (k, j)),
            ],
            out_specs=pl.BlockSpec((tm, tn), lambda i, j, k: (i, j)),
            scratch_shapes=[pltpu.VMEM((tm, tn), jnp.float32)],
        ),
        compiler_params=pltpu.CompilerParams(
            dimension_semantics=("parallel", "parallel", "arbitrary")),
        cost_estimate=cost,
    )(patches, w2d)


def _pick_tiles(M, K, Cout):
    """Tile sizes + padded extents (lane-dense, VMEM-bounded, pipelined)."""
    # M tile: target 512 rows; for smaller M split into two blocks so the
    # parallel M axis can still shard across 2 TensorCores (v7x megacore).
    M8 = _round_up(M, 8)
    if M8 >= 1024:
        tm = 512
    elif M8 >= 16:
        tm = _round_up(M8 // 2, 8)
    else:
        tm = M8
    M_p = _round_up(M8, tm)

    # Cout: pad to a multiple of 128 so output stores are lane-dense; use a
    # 256-wide tile when possible (fewer re-reads of each patch tile).
    N_p = _round_up(Cout, 128)
    tn = 256 if N_p % 256 == 0 else 128

    # K: single block when small (fast-path kernel), otherwise tile at 512
    # with f32 accumulation across the K grid axis.
    if K <= 512:
        tk = _round_up(K, 128)
        K_p = tk
    else:
        tk = 512
        K_p = _round_up(K, tk)
    return tm, tn, tk, M_p, N_p, K_p


# ------------------------------- BConv module ------------------------------ #
class BConvPallas:
    """Binary conv (binary weights + binary activations), forward only."""

    def __init__(self, in_chn, out_chn, kernel_size=3, stride=1, padding=1,
                 groups=1, dilation=1, bound=1.2, binary=True, *, key):
        assert groups == 1  # TODO(synk): grouped conv not implemented in this kernel
        self.in_channels = in_chn
        self.out_channels = out_chn
        self.kernel_size = kernel_size
        self.stride = stride
        self.padding = padding
        self.groups = groups
        self.dilation = dilation
        self.bound = bound
        self.binary = binary
        # weights: (out_chn, in_chn // groups, k, k), xavier_normal_(gain=2.0)
        shape = (out_chn, in_chn // groups, kernel_size, kernel_size)
        fan_in = shape[1] * kernel_size * kernel_size
        fan_out = shape[0] * kernel_size * kernel_size
        std = 2.0 * (2.0 / (fan_in + fan_out)) ** 0.5
        self.weights = std * jax.random.normal(key, shape, dtype=jnp.float32)

        # Hoisted out of the forward: sign + OIHW -> (KH*KW*Cin, Cout) in
        # bf16, computed once (inference weights are static).
        kk = kernel_size
        self.w2d_signed = (
            jnp.transpose(jnp.sign(self.weights), (2, 3, 1, 0))
            .reshape(kk * kk * (in_chn // groups), out_chn)
            .astype(jnp.bfloat16))

        # Jit the whole binary forward so the sign/pad/im2col/reshape glue
        # around the Pallas GEMM fuses into a single XLA computation.
        self._forward = jax.jit(self._forward_impl)

    def _forward_impl(self, x_nchw):
        N, Cin, H, W = x_nchw.shape
        Kk, s, p, d = self.kernel_size, self.stride, self.padding, self.dilation
        Cout = self.out_channels
        Ho = (H + 2 * p - d * (Kk - 1) - 1) // s + 1
        Wo = (W + 2 * p - d * (Kk - 1) - 1) // s + 1

        # --- glue: sign FIRST (then downcast), NCHW -> NHWC, pad, im2col ---
        xs = jnp.sign(x_nchw).astype(jnp.bfloat16)             # +/-1, 0 exact
        x = jnp.transpose(xs, (0, 2, 3, 1))                    # NHWC
        xp = jnp.pad(x, ((0, 0), (p, p), (p, p), (0, 0)))      # (N,Hp,Wp,Cin)
        cols = []
        for kh in range(Kk):
            for kw in range(Kk):
                cols.append(
                    xp[:, kh * d: kh * d + (Ho - 1) * s + 1: s,
                          kw * d: kw * d + (Wo - 1) * s + 1: s, :])
        col = jnp.stack(cols, axis=3)                          # (N,Ho,Wo,K*K,Cin)
        M = N * Ho * Wo
        K = Kk * Kk * Cin
        patches = col.reshape(M, K)                            # bf16 signed
        # TODO(synk): implicit im2col (shifted-window DMA inside the kernel)
        # would avoid materializing the KH*KW-inflated patch matrix in HBM.

        # --- pad to tile multiples (zero padding contributes 0 to the dot) ---
        tm, tn, tk, M_p, N_p, K_p = _pick_tiles(M, K, Cout)
        patches_p = jnp.pad(patches, ((0, M_p - M), (0, K_p - K)))
        w2d_p = jnp.pad(self.w2d_signed, ((0, K_p - K), (0, N_p - Cout)))

        # --- hot path: tiled bf16 GEMM with f32 accumulation on the MXU ---
        out2d = _bconv_gemm(patches_p, w2d_p, tm, tn, tk)      # (M_p, N_p) f32

        out = out2d[:M, :Cout].reshape(N, Ho, Wo, Cout)
        # Keep NCHW at the API boundary to match the PyTorch module.
        return jnp.transpose(out, (0, 3, 1, 2))

    def __call__(self, x_nchw):
        if not self.binary:
            # Non-binary path of the PyTorch module: plain conv (no Pallas).
            s, p, d = self.stride, self.padding, self.dilation
            return jax.lax.conv_general_dilated(
                x_nchw, self.weights,
                window_strides=(s, s),
                padding=[(p, p), (p, p)],
                rhs_dilation=(d, d),
                dimension_numbers=("NCHW", "OIHW", "NCHW"))
        return self._forward(x_nchw)


# ---------------------------------- main ----------------------------------- #
def _reference_bconv(x_nchw, w_oihw, stride, padding, dilation):
    xb = jnp.sign(x_nchw)
    wb = jnp.sign(w_oihw)
    return jax.lax.conv_general_dilated(
        xb, wb,
        window_strides=(stride, stride),
        padding=[(padding, padding), (padding, padding)],
        rhs_dilation=(dilation, dilation),
        dimension_numbers=("NCHW", "OIHW", "NCHW"))


if __name__ == "__main__":
    key = jax.random.PRNGKey(0)
    kx, kw = jax.random.split(key)

    N, Cin, H, W = 2, 4, 16, 16
    Cout = 8
    x = jax.random.normal(kx, (N, Cin, H, W), dtype=jnp.float32)

    conv = BConvPallas(Cin, Cout, kernel_size=3, stride=1, padding=1, key=kw)

    y = conv(x)
    y = jax.block_until_ready(y)

    y_ref = _reference_bconv(x, conv.weights, conv.stride, conv.padding,
                             conv.dilation)
    assert y.shape == (N, Cout, H, W)
    assert jnp.allclose(y, y_ref, atol=1e-4, rtol=1e-4)

    print("KERNEL_OK")
</pallas_src>

<mosaic_0001>
module attributes {stable_mosaic.version = 11 : i64} {
  func.func @_bconv_gemm_kernel_single_k(%arg0: i32, %arg1: i32, %arg2: memref<256x128xbf16, #tpu.memory_space<vmem>>, %arg3: memref<128x128xbf16, #tpu.memory_space<vmem>>, %arg4: memref<256x128xf32, #tpu.memory_space<vmem>>) attributes {dimension_semantics = [#tpu.dimension_semantics<parallel>, #tpu.dimension_semantics<parallel>], iteration_bounds = array<i64: 2, 1>, scalar_prefetch = 0 : i64, scratch_operands = 0 : i64, tpu.core_type = #tpu.core_type<tc>, window_params = [{transform_indices = @transform_0, window_bounds = array<i64: 256, 128>}, {transform_indices = @transform_1, window_bounds = array<i64: 128, 128>}, {transform_indices = @transform_2, window_bounds = array<i64: 256, 128>}]} {
    %c0 = arith.constant 0 : index
    %c0_0 = arith.constant 0 : index
    %0 = vector.load %arg2[%c0, %c0_0] : memref<256x128xbf16, #tpu.memory_space<vmem>>, vector<256x128xbf16>
    %c0_1 = arith.constant 0 : index
    %c0_2 = arith.constant 0 : index
    %1 = vector.load %arg3[%c0_1, %c0_2] : memref<128x128xbf16, #tpu.memory_space<vmem>>, vector<128x128xbf16>
    %cst = arith.constant dense<0.000000e+00> : vector<256x128xf32>
    %2 = tpu.matmul %0, %1, %cst {dimension_numbers = #tpu.dot_dimension_numbers<[1], [0], [0], [1], [0, 0, 1, 1], [], []>} : vector<256x128xbf16>, vector<128x128xbf16>, vector<256x128xf32> -> vector<256x128xf32>
    %c0_3 = arith.constant 0 : index
    %c0_4 = arith.constant 0 : index
    %3 = vector.load %arg4[%c0_3, %c0_4] : memref<256x128xf32, #tpu.memory_space<vmem>>, vector<256x128xf32>
    tpu.vector_store %arg4[%c0_3, %c0_4], %2 {strides = array<i32>} : memref<256x128xf32, #tpu.memory_space<vmem>>, vector<256x128xf32>,
    return
  }
  func.func @transform_0(%arg0: i32, %arg1: i32) -> (i32, i32) {
    %c0_i32 = arith.constant 0 : i32
    %c0_i32_0 = arith.constant 0 : i32
    return %arg0, %c0_i32 : i32, i32
  }
  func.func @transform_1(%arg0: i32, %arg1: i32) -> (i32, i32) {
    %c0_i32 = arith.constant 0 : i32
    %c0_i32_0 = arith.constant 0 : i32
    return %c0_i32, %arg1 : i32, i32
  }
  func.func @transform_2(%arg0: i32, %arg1: i32) -> (i32, i32) {
    %c0_i32 = arith.constant 0 : i32
    return %arg0, %arg1 : i32, i32
  }
}

</mosaic_0001>

<llo_original>
// kernel: _forward_impl.1
$region0: #{_forward_impl.1}
  #allocation0 [shape = 'u32[]', space=smem, size = 0x4, offset = 0x4, fixed_abs, tag = 'smem constant byte address 0x4 - core index']
  #allocation1 [shape = 'u32[144,128]{1,0:T(1,128)}', space=vmem, size = 0x12000, scoped, tag = 'internal scratch']
  %s0 = inlined_call_operand.vmem [shape: bf16[512,128], index: 0, kind: input, shape index: {}]
  %s1 = inlined_call_operand.vmem [shape: bf16[128,128], index: 1, kind: input, shape index: {}]
  %s2 = inlined_call_operand.vmem [shape: f32[512,128], index: 2, kind: output, shape index: {}]
  %s3 = sld [smem:[#allocation0]]
  $region41: #{_forward_impl.1} parent=0
    _
  %s5 = ssub.s32 1, %s3
  %s6 = scalar_select 0, %s5, %s3
  loop: start=0, step=1, limit=4
  $region2: #{_forward_impl.1} parent=0 // loop_pre_header
    _
  $region3: #{_forward_impl.1} parent=0 // loop_header
    %s8 = sphi 0, %s12
    %p9 = scmp.ge.s32.totalorder %s8, 4
    %s15 = sphi 0, %s27
    %s16 = sphi 0, %s23
    %s17 = sphi 0, %s15
    %s18 = sphi 0, %s16
    %s19 = sphi 0, %s17
    %s20 = sphi 0, %s18
    %s30 = sphi 0, %s32
    %s33 = sphi 0, %s30
    %s34 = sphi 0, %s33
    %s50 = sphi 0, %s34
    %s56 = sphi 0, %s58
    %s59 = sphi 0, %s56
    %s60 = sphi 0, %s59
    %s76 = sphi 0, %s60
    %s84 = sphi 0, %s86
    %s87 = sphi 0, %s84
    %s88 = sphi 0, %s87
    %s104 = sphi 0, %s88
  $region4: #{_forward_impl.1} parent=0 // loop_header_branch
    %11 = sbr.rel (%p9) target = $region8
  $region5: #{_forward_impl.1} parent=0 // loop_body
    %s13 = ssub.s32 %s8, 1
    %s14 = ssub.s32 %s8, 2
    %s21 = sadd.s32 1, %s16
    %p22 = scmp.ge.s32.totalorder %s21, 1
    %s23 = scalar_select %p22, 0, %s21
    %s24 = sadd.s32 1, %s15
    %s25 = scalar_select %p22, %s24, %s15
    %p26 = scmp.ge.s32.totalorder %s25, 2
    %s27 = scalar_select %p26, 0, %s25
    %s28 = ssub.s32 %s15, %s27
    %p29 = scmp.eq.s32.totalorder %s28, 0
    %s31 = sadd.s32 %s30, 1
    %s32 = scalar_select %p29, %s30, %s31
    %p35 = pneg %p29
    %p36 = scmp.eq.s32.totalorder %s8, 1
    %p37 = por %p35, %p36
    %p38 = scmp.ne.s32.totalorder %s30, %s33
    %p39 = scmp.eq.s32.totalorder %s8, 0
    %p40 = por %p38, %p39
    %p41 = scmp.ne.s32.totalorder %s30, %s33
    %p42 = scmp.eq.s32.totalorder %s13, 1
    %p43 = por %p41, %p42
    %p44 = scmp.ne.s32.totalorder %s33, %s34
    %p45 = scmp.eq.s32.totalorder %s13, 0
    %p46 = por %p44, %p45
    %p47 = scmp.ne.s32.totalorder %s33, %s34
    %p48 = scmp.eq.s32.totalorder %s14, 1
    %p49 = por %p47, %p48
    %p51 = scmp.ne.s32.totalorder %s34, %s50
    %p52 = scmp.eq.s32.totalorder %s14, 0
    %p53 = por %p51, %p52
    %s54 = ssub.s32 %s16, %s23
    %p55 = scmp.eq.s32.totalorder %s54, 0
    %s57 = sadd.s32 %s56, 1
    %s58 = scalar_select %p55, %s56, %s57
    %p61 = pneg %p55
    %p62 = scmp.eq.s32.totalorder %s8, 1
    %p63 = por %p61, %p62
    %p64 = scmp.ne.s32.totalorder %s56, %s59
    %p65 = scmp.eq.s32.totalorder %s8, 0
    %p66 = por %p64, %p65
    %p67 = scmp.ne.s32.totalorder %s56, %s59
    %p68 = scmp.eq.s32.totalorder %s13, 1
    %p69 = por %p67, %p68
    %p70 = scmp.ne.s32.totalorder %s59, %s60
    %p71 = scmp.eq.s32.totalorder %s13, 0
    %p72 = por %p70, %p71
    %p73 = scmp.ne.s32.totalorder %s59, %s60
    %p74 = scmp.eq.s32.totalorder %s14, 1
    %p75 = por %p73, %p74
    %p77 = scmp.ne.s32.totalorder %s60, %s76
    %p78 = scmp.eq.s32.totalorder %s14, 0
    %p79 = por %p77, %p78
    %s80 = ssub.s32 %s15, %s27
    %s81 = ssub.s32 %s16, %s23
    %s82 = sor.u32 %s80, %s81
    %p83 = scmp.eq.s32.totalorder %s82, 0
    %s85 = sadd.s32 %s84, 1
    %s86 = scalar_select %p83, %s84, %s85
    %p89 = pneg %p83
    %p90 = scmp.eq.s32.totalorder %s8, 1
    %p91 = por %p89, %p90
    %p92 = scmp.ne.s32.totalorder %s84, %s87
    %p93 = scmp.eq.s32.totalorder %s8, 0
    %p94 = por %p92, %p93
    %p95 = scmp.ne.s32.totalorder %s84, %s87
    %p96 = scmp.eq.s32.totalorder %s13, 1
    %p97 = por %p95, %p96
    %p98 = scmp.ne.s32.totalorder %s87, %s88
    %p99 = scmp.eq.s32.totalorder %s13, 0
    %p100 = por %p98, %p99
    %p101 = scmp.ne.s32.totalorder %s87, %s88
    %p102 = scmp.eq.s32.totalorder %s14, 1
    %p103 = por %p101, %p102
    %p105 = scmp.ne.s32.totalorder %s88, %s104
    %p106 = scmp.eq.s32.totalorder %s14, 0
    %p107 = por %p105, %p106
    %p108 = scmp.le.s32.totalorder 1, %s8
    %p109 = scmp.lt.s32.totalorder %s8, 3
    %p110 = pnand %p108, %p109
    %p111 = pneg %p110
    // Predicated region
    $region9: #{_forward_impl.1} parent=5 // pred_check
      _
    $region10: #{_forward_impl.1} parent=5 // pred_check_branch
      %113 = sbr.rel (%p110) target = $region12
    $region11: #{_forward_impl.1} parent=5 // pred_region
      %s114 = ssub.s32 %s8, 1
      // Predicated region
      $region13: #{_forward_impl.1} parent=11 // pred_check
        %p115 = pneg %p72
      $region14: #{_forward_impl.1} parent=11 // pred_check_branch
        %117 = sbr.rel (%p115) target = $region16
      $region15: #{_forward_impl.1} parent=11 // pred_region
        %p118 = scmp.lt.s32.totalorder %s18, 0
        %s119 = scalar_select %p118, %s18, 0
        %s120 = smul.addr %s119, 4
        %s121 = scalar_lea.vmem %s1, %s120
      $region16: #{_forward_impl.1} parent=11 // pred_fallthru
        _
    $region12: #{_forward_impl.1} parent=5 // pred_fallthru
      _
    %p122 = scmp.lt.s32.totalorder %s8, 2
    // Predicated region
    $region17: #{_forward_impl.1} parent=5 // pred_check
      %p123 = pneg %p122
    $region18: #{_forward_impl.1} parent=5 // pred_check_branch
      %125 = sbr.rel (%p123) target = $region20
    $region19: #{_forward_impl.1} parent=5 // pred_region
      // Predicated region
      $region21: #{_forward_impl.1} parent=19 // pred_check
        %p126 = pneg %p40
      $region22: #{_forward_impl.1} parent=19 // pred_check_branch
        %128 = sbr.rel (%p126) target = $region24
      $region23: #{_forward_impl.1} parent=19 // pred_region
        %s129 = smul.u32 32, %s15
        %p130 = scmp.lt.s32.totalorder %s129, 63
        %s131 = scalar_select %p130, %s129, 63
        %s132 = smul.addr %s131, 4
        %s133 = scalar_lea.vmem %s0, %s132
        %s134 = smul.u32 32, %s15
      $region24: #{_forward_impl.1} parent=19 // pred_fallthru
        _
    $region20: #{_forward_impl.1} parent=5 // pred_fallthru
      _
    %p135 = scmp.le.s32.totalorder 1, %s8
    %p136 = scmp.lt.s32.totalorder %s8, 3
    %p137 = pnand %p135, %p136
    %p138 = pneg %p137
    // Predicated region
    $region25: #{_forward_impl.1} parent=5 // pred_check
      _
    $region26: #{_forward_impl.1} parent=5 // pred_check_branch
      %140 = sbr.rel (%p137) target = $region28
    $region27: #{_forward_impl.1} parent=5 // pred_region
      %s141 = ssub.s32 %s8, 1
      %s142 = smul.u32 32, %s17
      %p143 = scmp.lt.s32.totalorder %s142, 63
      %s144 = scalar_select %p143, %s142, 63
      %s145 = smul.addr %s144, 4
      %s146 = scalar_lea.vmem %s0, %s145
      %p147 = pneg %p46
      %p148 = pneg %p43
      %p149 = scmp.lt.s32.totalorder %s18, 0
      %s150 = scalar_select %p149, %s18, 0
      %s151 = smul.addr %s150, 4
      %s152 = scalar_lea.vmem %s1, %s151
      %p153 = pneg %p72
      %p154 = pneg %p69
      %p155 = pneg %p100
      %p156 = pneg %p97
      %s157 = smul.u32 32, %s17
      %p158 = scmp.lt.s32.totalorder %s157, 63
      %s159 = scalar_select %p158, %s157, 63
      %p160 = scmp.lt.s32.totalorder %s18, 0
      %s161 = scalar_select %p160, %s18, 0
      %s162 = sadd.s32 %s161, %s159
      %s163 = smul.addr %s162, 8
      %s164 = scalar_lea.vmem %s2, %s163
      %s165 = smul.u32 32, %s17
      %p166 = scmp.lt.s32.totalorder %s165, 63
      %s167 = scalar_select %p166, %s165, 63
      %s168 = smul.addr %s167, 4
      %s169 = scalar_lea.vmem %s0, %s168
      %s170 = smul.u32 32, %s17
      %p171 = scmp.lt.s32.totalorder %s18, 0
      %s172 = scalar_select %p171, %s18, 0
      %s173 = smul.addr %s172, 4
      %s174 = scalar_lea.vmem %s1, %s173
      %s175 = smul.u32 32, %s17
      %p176 = scmp.lt.s32.totalorder %s175, 63
      %s177 = scalar_select %p176, %s175, 63
      %p178 = scmp.lt.s32.totalorder %s18, 0
      %s179 = scalar_select %p178, %s18, 0
      %s180 = sadd.s32 %s179, %s177
      %s181 = smul.addr %s180, 8
      %s182 = scalar_lea.vmem %s2, %s181
      %s183 = smul.u32 32, %s17
      %v185 = vld [vmem:[%s169] sm:$0xf]
      %v186 = vld [vmem:[%s169 + $0x4] sm:$0xf]
      %v187 = vld [vmem:[%s169 + $0x8] sm:$0xf]
      %v188 = vld [vmem:[%s169 + $0xc] sm:$0xf]
      %v189 = vld [vmem:[%s169 + $0x10] sm:$0xf]
      %v190 = vld [vmem:[%s169 + $0x14] sm:$0xf]
      %v191 = vld [vmem:[%s169 + $0x18] sm:$0xf]
      %v192 = vld [vmem:[%s169 + $0x1c] sm:$0xf]
      %v193 = vld [vmem:[%s169 + $0x20] sm:$0xf]
      %v194 = vld [vmem:[%s169 + $0x24] sm:$0xf]
      %v195 = vld [vmem:[%s169 + $0x28] sm:$0xf]
      %v196 = vld [vmem:[%s169 + $0x2c] sm:$0xf]
      %v197 = vld [vmem:[%s169 + $0x30] sm:$0xf]
      %v198 = vld [vmem:[%s169 + $0x34] sm:$0xf]
      %v199 = vld [vmem:[%s169 + $0x38] sm:$0xf]
      %v200 = vld [vmem:[%s169 + $0x3c] sm:$0xf]
      %v201 = vld [vmem:[%s169 + $0x40] sm:$0xf]
      %v202 = vld [vmem:[%s169 + $0x44] sm:$0xf]
      %v203 = vld [vmem:[%s169 + $0x48] sm:$0xf]
      %v204 = vld [vmem:[%s169 + $0x4c] sm:$0xf]
      %v205 = vld [vmem:[%s169 + $0x50] sm:$0xf]
      %v206 = vld [vmem:[%s169 + $0x54] sm:$0xf]
      %v207 = vld [vmem:[%s169 + $0x58] sm:$0xf]
      %v208 = vld [vmem:[%s169 + $0x5c] sm:$0xf]
      %v209 = vld [vmem:[%s169 + $0x60] sm:$0xf]
      %v210 = vld [vmem:[%s169 + $0x64] sm:$0xf]
      %v211 = vld [vmem:[%s169 + $0x68] sm:$0xf]
      %v212 = vld [vmem:[%s169 + $0x6c] sm:$0xf]
      %v213 = vld [vmem:[%s169 + $0x70] sm:$0xf]
      %v214 = vld [vmem:[%s169 + $0x74] sm:$0xf]
      %v215 = vld [vmem:[%s169 + $0x78] sm:$0xf]
      %v216 = vld [vmem:[%s169 + $0x7c] sm:$0xf]
      %v217 = vld [vmem:[%s174] sm:$0xf]
      %v218 = vld [vmem:[%s174 + $0x4] sm:$0xf]
      %v219 = vld [vmem:[%s174 + $0x8] sm:$0xf]
      %v220 = vld [vmem:[%s174 + $0xc] sm:$0xf]
      %v221 = vld [vmem:[%s174 + $0x10] sm:$0xf]
      %v222 = vld [vmem:[%s174 + $0x14] sm:$0xf]
      %v223 = vld [vmem:[%s174 + $0x18] sm:$0xf]
      %v224 = vld [vmem:[%s174 + $0x1c] sm:$0xf]
      %v225 = vld [vmem:[%s174 + $0x20] sm:$0xf]
      %v226 = vld [vmem:[%s174 + $0x24] sm:$0xf]
      %v227 = vld [vmem:[%s174 + $0x28] sm:$0xf]
      %v228 = vld [vmem:[%s174 + $0x2c] sm:$0xf]
      %v229 = vld [vmem:[%s174 + $0x30] sm:$0xf]
      %v230 = vld [vmem:[%s174 + $0x34] sm:$0xf]
      %v231 = vld [vmem:[%s174 + $0x38] sm:$0xf]
      %v232 = vld [vmem:[%s174 + $0x3c] sm:$0xf]
      %v265 = vunpack.c.l.b16 %v185
      %v266 = vunpack.c.l.b16 %v186
      %v267 = vunpack.c.l.b16 %v187
      %v268 = vunpack.c.l.b16 %v188
      %v269 = vunpack.c.l.b16 %v189
      %v270 = vunpack.c.l.b16 %v190
      %v271 = vunpack.c.l.b16 %v191
      %v272 = vunpack.c.l.b16 %v192
      %v273 = vunpack.c.l.b16 %v193
      %v274 = vunpack.c.l.b16 %v194
      %v275 = vunpack.c.l.b16 %v195
      %v276 = vunpack.c.l.b16 %v196
      %v277 = vunpack.c.l.b16 %v197
      %v278 = vunpack.c.l.b16 %v198
      %v279 = vunpack.c.l.b16 %v199
      %v280 = vunpack.c.l.b16 %v200
      %v281 = vunpack.c.l.b16 %v201
      %v282 = vunpack.c.l.b16 %v202
      %v283 = vunpack.c.l.b16 %v203
      %v284 = vunpack.c.l.b16 %v204
      %v285 = vunpack.c.l.b16 %v205
      %v286 = vunpack.c.l.b16 %v206
      %v287 = vunpack.c.l.b16 %v207
      %v288 = vunpack.c.l.b16 %v208
      %v289 = vunpack.c.l.b16 %v209
      %v290 = vunpack.c.l.b16 %v210
      %v291 = vunpack.c.l.b16 %v211
      %v292 = vunpack.c.l.b16 %v212
      %v293 = vunpack.c.l.b16 %v213
      %v294 = vunpack.c.l.b16 %v214
      %v295 = vunpack.c.l.b16 %v215
      %v296 = vunpack.c.l.b16 %v216
      %v297 = vpack.c.b16 %v266, %v265
      %v298 = vpack.c.b16 %v268, %v267
      %v299 = vpack.c.b16 %v270, %v269
      %v300 = vpack.c.b16 %v272, %v271
      %v301 = vpack.c.b16 %v274, %v273
      %v302 = vpack.c.b16 %v276, %v275
      %v303 = vpack.c.b16 %v278, %v277
      %v304 = vpack.c.b16 %v280, %v279
      %v305 = vpack.c.b16 %v282, %v281
      %v306 = vpack.c.b16 %v284, %v283
      %v307 = vpack.c.b16 %v286, %v285
      %v308 = vpack.c.b16 %v288, %v287
      %v309 = vpack.c.b16 %v290, %v289
      %v310 = vpack.c.b16 %v292, %v291
      %v311 = vpack.c.b16 %v294, %v293
      %v312 = vpack.c.b16 %v296, %v295
      %v345 = vunpack.c.l.b16 %v217
      %v346 = vunpack.c.l.b16 %v218
      %v347 = vunpack.c.l.b16 %v219
      %v348 = vunpack.c.l.b16 %v220
      %v349 = vunpack.c.l.b16 %v221
      %v350 = vunpack.c.l.b16 %v222
      %v351 = vunpack.c.l.b16 %v223
      %v352 = vunpack.c.l.b16 %v224
      %v353 = vunpack.c.l.b16 %v225
      %v354 = vunpack.c.l.b16 %v226
      %v355 = vunpack.c.l.b16 %v227
      %v356 = vunpack.c.l.b16 %v228
      %v357 = vunpack.c.l.b16 %v229
      %v358 = vunpack.c.l.b16 %v230
      %v359 = vunpack.c.l.b16 %v231
      %v360 = vunpack.c.l.b16 %v232
      %v361 = vpack.c.b16 %v346, %v345
      %v362 = vpack.c.b16 %v348, %v347
      %v363 = vpack.c.b16 %v350, %v349
      %v364 = vpack.c.b16 %v352, %v351
      %v365 = vpack.c.b16 %v354, %v353
      %v366 = vpack.c.b16 %v356, %v355
      %v367 = vpack.c.b16 %v358, %v357
      %v368 = vpack.c.b16 %v360, %v359
      %377 = vmatprep.subr.bf16.mxu0 0
      %378 = vmatpush1.bf16.msra.mxu0 %v361
      %379 = vmatprep.subr.bf16.mxu0 0
      %380 = vmatpush1.bf16.msra.mxu0 %v362
      %381 = vmatprep.subr.bf16.mxu0 0
      %382 = vmatpush1.bf16.msra.mxu0 %v363
      %383 = vmatprep.subr.bf16.mxu0 0
      %384 = vmatpush1.bf16.msra.mxu0 %v364
      %385 = vmatprep.subr.bf16.mxu0 0
      %386 = vmatpush1.bf16.msra.mxu0 %v365
      %387 = vmatprep.subr.bf16.mxu0 0
      %388 = vmatpush1.bf16.msra.mxu0 %v366
      %389 = vmatprep.subr.bf16.mxu0 0
      %390 = vmatpush1.bf16.msra.mxu0 %v367
      %391 = vmatprep.subr.bf16.mxu0 0
      %392 = vmatpush1.bf16.msra.mxu0 %v368
      %393 = vmatprep.subr.bf16.mxu0 0
      %394 = vmatpush1.bf16.msra.mxu0 0
      %395 = vmatprep.subr.bf16.mxu0 0
      %396 = vmatpush1.bf16.msra.mxu0 0
      %397 = vmatprep.subr.bf16.mxu0 0
      %398 = vmatpush1.bf16.msra.mxu0 0
      %399 = vmatprep.subr.bf16.mxu0 0
      %400 = vmatpush1.bf16.msra.mxu0 0
      %401 = vmatprep.subr.bf16.mxu0 0
      %402 = vmatpush1.bf16.msra.mxu0 0
      %403 = vmatprep.subr.bf16.mxu0 0
      %404 = vmatpush1.bf16.msra.mxu0 0
      %405 = vmatprep.subr.bf16.mxu0 0
      %406 = vmatpush1.bf16.msra.mxu0 0
      %407 = vmatprep.subr.bf16.mxu0 0
      %408 = vmatpush1.bf16.msra.mxu0 0
      %409 = vmatprep.mubr.bf16.mxu0 0
      %410 = vmatmul.mubr.bf16.gmra.mrb[0].mxu0 %v297
      %v411 = vpop.f32.mrb[0].mxu0
      %v412 = vadd.f32 0.0, %v411
      %v413 = vpop.f32.mrb[0].mxu0
      %v414 = vpop.f32.mrb[0].mxu0
      %v415 = vadd.f32 0.0, %v414
      %v416 = vpop.f32.mrb[0].mxu0
      %417 = vmatprep.mubr.bf16.mxu0 0
      %418 = vmatmul.mubr.bf16.gmra.mrb[0].mxu0 %v298
      %v419 = vpop.f32.mrb[0].mxu0
      %v420 = vadd.f32 0.0, %v419
      %v421 = vpop.f32.mrb[0].mxu0
      %v422 = vpop.f32.mrb[0].mxu0
      %v423 = vadd.f32 0.0, %v422
      %v424 = vpop.f32.mrb[0].mxu0
      %425 = vmatprep.mubr.bf16.mxu0 0
      %426 = vmatmul.mubr.bf16.gmra.mrb[0].mxu0 %v299
      %v427 = vpop.f32.mrb[0].mxu0
      %v428 = vadd.f32 0.0, %v427
      %v429 = vpop.f32.mrb[0].mxu0
      %v430 = vpop.f32.mrb[0].mxu0
      %v431 = vadd.f32 0.0, %v430
      %v432 = vpop.f32.mrb[0].mxu0
      %433 = vmatprep.mubr.bf16.mxu0 0
      %434 = vmatmul.mubr.bf16.gmra.mrb[0].mxu0 %v300
      %v435 = vpop.f32.mrb[0].mxu0
      %v436 = vadd.f32 0.0, %v435
      %v437 = vpop.f32.mrb[0].mxu0
      %v438 = vpop.f32.mrb[0].mxu0
      %v439 = vadd.f32 0.0, %v438
      %v440 = vpop.f32.mrb[0].mxu0
      %441 = vmatprep.mubr.bf16.mxu0 0
      %442 = vmatmul.mubr.bf16.gmra.mrb[0].mxu0 %v301
      %v443 = vpop.f32.mrb[0].mxu0
      %v444 = vadd.f32 0.0, %v443
      %v445 = vpop.f32.mrb[0].mxu0
      %v446 = vpop.f32.mrb[0].mxu0
      %v447 = vadd.f32 0.0, %v446
      %v448 = vpop.f32.mrb[0].mxu0
      %449 = vmatprep.mubr.bf16.mxu0 0
      %450 = vmatmul.mubr.bf16.gmra.mrb[0].mxu0 %v302
      %v451 = vpop.f32.mrb[0].mxu0
      %v452 = vadd.f32 0.0, %v451
      %v453 = vpop.f32.mrb[0].mxu0
      %v454 = vpop.f32.mrb[0].mxu0
      %v455 = vadd.f32 0.0, %v454
      %v456 = vpop.f32.mrb[0].mxu0
      %457 = vmatprep.mubr.bf16.mxu0 0
      %458 = vmatmul.mubr.bf16.gmra.mrb[0].mxu0 %v303
      %v459 = vpop.f32.mrb[0].mxu0
      %v460 = vadd.f32 0.0, %v459
      %v461 = vpop.f32.mrb[0].mxu0
      %v462 = vpop.f32.mrb[0].mxu0
      %v463 = vadd.f32 0.0, %v462
      %v464 = vpop.f32.mrb[0].mxu0
      %465 = vmatprep.mubr.bf16.mxu0 0
      %466 = vmatmul.mubr.bf16.gmra.mrb[0].mxu0 %v304
      %v467 = vpop.f32.mrb[0].mxu0
      %v468 = vadd.f32 0.0, %v467
      %v469 = vpop.f32.mrb[0].mxu0
      %v470 = vpop.f32.mrb[0].mxu0
      %v471 = vadd.f32 0.0, %v470
      %v472 = vpop.f32.mrb[0].mxu0
      %473 = vmatprep.mubr.bf16.mxu0 0
      %474 = vmatmul.mubr.bf16.gmra.mrb[0].mxu0 %v305
      %v475 = vpop.f32.mrb[0].mxu0
      %v476 = vadd.f32 0.0, %v475
      %v477 = vpop.f32.mrb[0].mxu0
      %v478 = vpop.f32.mrb[0].mxu0
      %v479 = vadd.f32 0.0, %v478
      %v480 = vpop.f32.mrb[0].mxu0
      %481 = vmatprep.mubr.bf16.mxu0 0
      %482 = vmatmul.mubr.bf16.gmra.mrb[0].mxu0 %v306
      %v483 = vpop.f32.mrb[0].mxu0
      %v484 = vadd.f32 0.0, %v483
      %v485 = vpop.f32.mrb[0].mxu0
      %v486 = vpop.f32.mrb[0].mxu0
      %v487 = vadd.f32 0.0, %v486
      %v488 = vpop.f32.mrb[0].mxu0
      %489 = vmatprep.mubr.bf16.mxu0 0
      %490 = vmatmul.mubr.bf16.gmra.mrb[0].mxu0 %v307
      %v491 = vpop.f32.mrb[0].mxu0
      %v492 = vadd.f32 0.0, %v491
      %v493 = vpop.f32.mrb[0].mxu0
      %v494 = vpop.f32.mrb[0].mxu0
      %v495 = vadd.f32 0.0, %v494
      %v496 = vpop.f32.mrb[0].mxu0
      %497 = vmatprep.mubr.bf16.mxu0 0
      %498 = vmatmul.mubr.bf16.gmra.mrb[0].mxu0 %v308
      %v499 = vpop.f32.mrb[0].mxu0
      %v500 = vadd.f32 0.0, %v499
      %v501 = vpop.f32.mrb[0].mxu0
      %v502 = vpop.f32.mrb[0].mxu0
      %v503 = vadd.f32 0.0, %v502
      %v504 = vpop.f32.mrb[0].mxu0
      %505 = vmatprep.mubr.bf16.mxu0 0
      %506 = vmatmul.mubr.bf16.gmra.mrb[0].mxu0 %v309
      %v507 = vpop.f32.mrb[0].mxu0
      %v508 = vadd.f32 0.0, %v507
      %v509 = vpop.f32.mrb[0].mxu0
      %v510 = vpop.f32.mrb[0].mxu0
      %v511 = vadd.f32 0.0, %v510
      %v512 = vpop.f32.mrb[0].mxu0
      %513 = vmatprep.mubr.bf16.mxu0 0
      %514 = vmatmul.mubr.bf16.gmra.mrb[0].mxu0 %v310
      %v515 = vpop.f32.mrb[0].mxu0
      %v516 = vadd.f32 0.0, %v515
      %v517 = vpop.f32.mrb[0].mxu0
      %v518 = vpop.f32.mrb[0].mxu0
      %v519 = vadd.f32 0.0, %v518
      %v520 = vpop.f32.mrb[0].mxu0
      %521 = vmatprep.mubr.bf16.mxu0 0
      %522 = vmatmul.mubr.bf16.gmra.mrb[0].mxu0 %v311
      %v523 = vpop.f32.mrb[0].mxu0
      %v524 = vadd.f32 0.0, %v523
      %v525 = vpop.f32.mrb[0].mxu0
      %v526 = vpop.f32.mrb[0].mxu0
      %v527 = vadd.f32 0.0, %v526
      %v528 = vpop.f32.mrb[0].mxu0
      %529 = vmatprep.mubr.bf16.mxu0 0
      %530 = vmatmul.mubr.bf16.gmra.mrb[0].mxu0 %v312
      %v531 = vpop.f32.mrb[0].mxu0
      %v532 = vadd.f32 0.0, %v531
      %v533 = vpop.f32.mrb[0].mxu0
      %v534 = vpop.f32.mrb[0].mxu0
      %v535 = vadd.f32 0.0, %v534
      %v536 = vpop.f32.mrb[0].mxu0
      %537 = vdwg.mxu0
      %538 = vst [vmem:[%s182] sm:$0xff] %v412
      %539 = vst [vmem:[%s182 + $0x8] sm:$0xff] %v415
      %540 = vst [vmem:[%s182 + $0x10] sm:$0xff] %v420
      %541 = vst [vmem:[%s182 + $0x18] sm:$0xff] %v423
      %542 = vst [vmem:[%s182 + $0x20] sm:$0xff] %v428
      %543 = vst [vmem:[%s182 + $0x28] sm:$0xff] %v431
      %544 = vst [vmem:[%s182 + $0x30] sm:$0xff] %v436
      %545 = vst [vmem:[%s182 + $0x38] sm:$0xff] %v439
      %546 = vst [vmem:[%s182 + $0x40] sm:$0xff] %v444
      %547 = vst [vmem:[%s182 + $0x48] sm:$0xff] %v447
      %548 = vst [vmem:[%s182 + $0x50] sm:$0xff] %v452
      %549 = vst [vmem:[%s182 + $0x58] sm:$0xff] %v455
      %550 = vst [vmem:[%s182 + $0x60] sm:$0xff] %v460
      %551 = vst [vmem:[%s182 + $0x68] sm:$0xff] %v463
      %552 = vst [vmem:[%s182 + $0x70] sm:$0xff] %v468
      %553 = vst [vmem:[%s182 + $0x78] sm:$0xff] %v471
      %554 = vst [vmem:[%s182 + $0x80] sm:$0xff] %v476
      %555 = vst [vmem:[%s182 + $0x88] sm:$0xff] %v479
      %556 = vst [vmem:[%s182 + $0x90] sm:$0xff] %v484
      %557 = vst [vmem:[%s182 + $0x98] sm:$0xff] %v487
      %558 = vst [vmem:[%s182 + $0xa0] sm:$0xff] %v492
      %559 = vst [vmem:[%s182 + $0xa8] sm:$0xff] %v495
      %560 = vst [vmem:[%s182 + $0xb0] sm:$0xff] %v500
      %561 = vst [vmem:[%s182 + $0xb8] sm:$0xff] %v503
      %562 = vst [vmem:[%s182 + $0xc0] sm:$0xff] %v508
      %563 = vst [vmem:[%s182 + $0xc8] sm:$0xff] %v511
      %564 = vst [vmem:[%s182 + $0xd0] sm:$0xff] %v516
      %565 = vst [vmem:[%s182 + $0xd8] sm:$0xff] %v519
      %566 = vst [vmem:[%s182 + $0xe0] sm:$0xff] %v524
      %567 = vst [vmem:[%s182 + $0xe8] sm:$0xff] %v527
      %568 = vst [vmem:[%s182 + $0xf0] sm:$0xff] %v532
      %569 = vst [vmem:[%s182 + $0xf8] sm:$0xff] %v535
      %s570 = smul.u32 32, %s17
      %p571 = scmp.lt.s32.totalorder %s570, 63
      %s572 = scalar_select %p571, %s570, 63
      %p573 = scmp.lt.s32.totalorder %s18, 0
      %s574 = scalar_select %p573, %s18, 0
      %s575 = sadd.s32 %s574, %s572
      %s576 = smul.addr %s575, 8
      %s577 = scalar_lea.vmem %s2, %s576
      // Predicated region
      $region29: #{_forward_impl.1} parent=27 // pred_check
        %p578 = pneg %p97
      $region30: #{_forward_impl.1} parent=27 // pred_check_branch
        %580 = sbr.rel (%p578) target = $region32
      $region31: #{_forward_impl.1} parent=27 // pred_region
        %s581 = smul.u32 32, %s17
      $region32: #{_forward_impl.1} parent=27 // pred_fallthru
        _
    $region28: #{_forward_impl.1} parent=5 // pred_fallthru
      _
    %p582 = scmp.le.s32.totalorder 2, %s8
    // Predicated region
    $region33: #{_forward_impl.1} parent=5 // pred_check
      %p583 = pneg %p582
    $region34: #{_forward_impl.1} parent=5 // pred_check_branch
      %585 = sbr.rel (%p583) target = $region36
    $region35: #{_forward_impl.1} parent=5 // pred_region
      %s586 = ssub.s32 %s8, 2
      // Predicated region
      $region37: #{_forward_impl.1} parent=35 // pred_check
        %p587 = pneg %p103
      $region38: #{_forward_impl.1} parent=35 // pred_check_branch
        %589 = sbr.rel (%p587) target = $region40
      $region39: #{_forward_impl.1} parent=35 // pred_region
        %s590 = smul.u32 32, %s19
        %p591 = scmp.lt.s32.totalorder %s590, 63
        %s592 = scalar_select %p591, %s590, 63
        %p593 = scmp.lt.s32.totalorder %s20, 0
        %s594 = scalar_select %p593, %s20, 0
        %s595 = sadd.s32 %s594, %s592
        %s596 = smul.addr %s595, 8
        %s597 = scalar_lea.vmem %s2, %s596
      $region40: #{_forward_impl.1} parent=35 // pred_fallthru
        _
    $region36: #{_forward_impl.1} parent=5 // pred_fallthru
      _
  $region6: #{_forward_impl.1} parent=0 // loop_footer
    %s12 = sadd.s32 1, %s8
  $region7: #{_forward_impl.1} parent=0 // loop_footer_branch
    %7 = sbr.rel target = $region3
  $region8: #{_forward_impl.1} parent=0 // loop_exit
    _

</llo_original>
